<compile_context>
chip_gen: v6e
topology: v6e:2x2x1
jax: 0.10.0
libtpu: 0.0.40
codegen_flags: <defaults>
</compile_context>

<pallas_src>
import functools

import jax
import jax.numpy as jnp
from jax import lax
from jax.experimental import pallas as pl
from jax.experimental.pallas import tpu as pltpu


def _round_up(x, m):
    return ((x + m - 1) // m) * m


_VMEM_TILE_BUDGET = 24 * 1024 * 1024   # double-buffered working-set target (bytes)


def _pick_tiles(U, E_pad, d, x_itemsize, v_itemsize, out_itemsize):
    """Choose (TU, TE): batch/ensemble tile sizes that fit the VMEM budget."""
    # Ensemble (lane) tile: multiple of 128 that divides E_pad.
    if E_pad <= 1024:
        TE = E_pad
    else:
        TE = 128
        for cand in (1024, 512, 256):
            if E_pad % cand == 0:
                TE = cand
                break

    # Batch (sublane) tile: big tiles amortize the ~0.35us/step pipeline overhead on a
    # mem-bound kernel, but keep >= 2 batch tiles for mid/large U so v7x's two
    # TensorCores both get work.
    if U <= 256:
        TU = _round_up(U, 8)               # single small tile; launch overhead dominates
    else:
        TU = min(2048, _round_up((U + 1) // 2, 8))

    # Respect the VMEM budget (double-buffered X, V and output tiles).
    def working_set(tu, te):
        return 2 * (tu * d * x_itemsize + te * d * v_itemsize + tu * te * out_itemsize)

    while working_set(TU, TE) > _VMEM_TILE_BUDGET and TU > 8:
        TU = max(8, _round_up(TU // 2, 8))
    return TU, TE


def _xv_matmul_kernel(x_ref, v_ref, o_ref, *, compute_dtype):
    """out_tile[u, i] = sum_l X_tile[u, l] * V_tile[i, l]  on the MXU (f32 accumulate)."""
    x = x_ref[...].astype(compute_dtype)          # in-kernel cast: no X copy in HBM
    v = v_ref[...]                                # already compute_dtype (tiny, cast once)
    o_ref[...] = lax.dot_general(
        x, v,
        dimension_numbers=(((1,), (1,)), ((), ())),   # contract d with d, no transpose
        preferred_element_type=jnp.float32,
    ).astype(o_ref.dtype)


@functools.partial(jax.jit, static_argnames=("compute_dtype", "out_dtype"))
def fcn2_ensemble_forward(A, W0, X, *, compute_dtype=jnp.float32, out_dtype=jnp.float32):
    """out[u, i] = sum_{k,l} A[i,k] * W0[i,k,l] * X.squeeze()[u,l]  -> (U, E)."""
    compute_dtype = jnp.dtype(compute_dtype)
    out_dtype = jnp.dtype(out_dtype)

    E, n1, d = W0.shape

    # Mirror X.squeeze() from the PyTorch module.  Guard degenerate cases (e.g. d == 1)
    # where squeeze drops too many dims by reshaping back to (-1, d).
    Xp = jnp.squeeze(X)
    if Xp.ndim != 2 or Xp.shape[-1] != d:
        Xp = Xp.reshape(-1, d)
    U = Xp.shape[0]

    # ---- 1) Fold A into W0 once with plain XLA (fuses with pad/cast HLOs) --------------
    V = jnp.einsum("ik,ikl->il",
                   A.astype(jnp.float32), W0.astype(jnp.float32),
                   precision=lax.Precision.HIGHEST)                 # (E, d) f32

    # ---- 2) Lane-pad only the tiny folded weight; X stays as-is ------------------------
    E_pad = _round_up(E, 128)
    V_pad = jnp.pad(V, ((0, E_pad - E), (0, 0))).astype(compute_dtype)   # (E_pad, d)

    TU, TE = _pick_tiles(U, E_pad, d,
                         Xp.dtype.itemsize, compute_dtype.itemsize, out_dtype.itemsize)
    grid = (pl.cdiv(U, TU), E_pad // TE)

    # ---- 3) Single dense matmul, grid over (batch tiles, ensemble tiles) ---------------
    out_pad = pl.pallas_call(
        functools.partial(_xv_matmul_kernel, compute_dtype=compute_dtype),
        out_shape=jax.ShapeDtypeStruct((U, E_pad), out_dtype),
        grid=grid,
        in_specs=[
            pl.BlockSpec((TU, d), lambda i, j: (i, 0)),    # X: tiled over batch (pipelined)
            pl.BlockSpec((TE, d), lambda i, j: (j, 0)),    # V: tiny, tiled over ensembles
        ],
        out_specs=pl.BlockSpec((TU, TE), lambda i, j: (i, j)),  # (U, E) layout directly
        compiler_params=pltpu.CompilerParams(
            dimension_semantics=("parallel", "parallel"),   # megacore sharding on v7x
            vmem_limit_bytes=48 * 1024 * 1024,              # fits v7x 64 MiB; ample on v5e/v6e
        ),
    )(Xp, V_pad)

    # Only the lane padding is sliced off; batch dim is already exact.  When E is a
    # multiple of 128 (common production case) no slice HLO is emitted at all.
    return out_pad if E_pad == E else out_pad[:, :E]


# TODO(synk): h_activation ('ikl,ul->uik') is a separate method, not part of forward;
# not implemented here.


if __name__ == "__main__":
    # Small, module-consistent shapes.
    d = 32          # input dim
    n1 = 64         # hidden width
    ensembles = 4
    batch = 8
    s2W = 1.0 / d
    s2A = 1.0 / n1

    key = jax.random.PRNGKey(0)
    kW, kA, kX = jax.random.split(key, 3)

    # Deterministic parameter init (normal(0, sqrt(s2))), like the PyTorch __init__.
    W0 = (s2W ** 0.5) * jax.random.normal(kW, (ensembles, n1, d), dtype=jnp.float32)
    A = (s2A ** 0.5) * jax.random.normal(kA, (ensembles, n1), dtype=jnp.float32)

    # Input with a squeezable singleton dim, as the forward expects X.squeeze().
    X = jax.random.normal(kX, (batch, 1, d), dtype=jnp.float32)

    # Pure-JAX reference (full precision).
    ref = jnp.einsum("ik,ikl,ul->ui", A, W0, jnp.squeeze(X),
                     precision=lax.Precision.HIGHEST)

    # Exact path (f32 MXU inputs, f32 output) — tight tolerance.
    out_f32 = jax.block_until_ready(fcn2_ensemble_forward(A, W0, X))
    assert out_f32.shape == (batch, ensembles), out_f32.shape
    assert jnp.allclose(out_f32, ref, atol=1e-5, rtol=1e-5), (
        float(jnp.max(jnp.abs(out_f32 - ref))))

    # Fast path (bf16 MXU inputs, f32 accumulate/output) — looser tolerance.
    out_bf16c = jax.block_until_ready(
        fcn2_ensemble_forward(A, W0, X, compute_dtype=jnp.bfloat16))
    assert out_bf16c.shape == (batch, ensembles), out_bf16c.shape
    assert jnp.allclose(out_bf16c, ref, atol=5e-2, rtol=5e-2), (
        float(jnp.max(jnp.abs(out_bf16c - ref))))

    # Fastest path (bf16 compute + bf16 output writeback).
    out_bf16o = jax.block_until_ready(
        fcn2_ensemble_forward(A, W0, X, compute_dtype=jnp.bfloat16,
                              out_dtype=jnp.bfloat16))
    assert out_bf16o.dtype == jnp.bfloat16
    assert jnp.allclose(out_bf16o.astype(jnp.float32), ref, atol=5e-2, rtol=5e-2), (
        float(jnp.max(jnp.abs(out_bf16o.astype(jnp.float32) - ref))))

    print("KERNEL_OK")
</pallas_src>

<mosaic_0001>
module attributes {stable_mosaic.version = 11 : i64} {
  func.func @_xv_matmul_kernel(%arg0: i32, %arg1: i32, %arg2: memref<8x32xf32, #tpu.memory_space<vmem>>, %arg3: memref<128x32xf32, #tpu.memory_space<vmem>>, %arg4: memref<8x128xf32, #tpu.memory_space<vmem>>) attributes {dimension_semantics = [#tpu.dimension_semantics<parallel>, #tpu.dimension_semantics<parallel>], iteration_bounds = array<i64: 1, 1>, scalar_prefetch = 0 : i64, scratch_operands = 0 : i64, tpu.core_type = #tpu.core_type<tc>, window_params = [{transform_indices = @transform_0, window_bounds = array<i64: 8, 32>}, {transform_indices = @transform_1, window_bounds = array<i64: 128, 32>}, {transform_indices = @transform_2, window_bounds = array<i64: 8, 128>}]} {
    %c0 = arith.constant 0 : index
    %c0_0 = arith.constant 0 : index
    %0 = vector.load %arg2[%c0, %c0_0] : memref<8x32xf32, #tpu.memory_space<vmem>>, vector<8x32xf32>
    %c0_1 = arith.constant 0 : index
    %c0_2 = arith.constant 0 : index
    %1 = vector.load %arg3[%c0_1, %c0_2] : memref<128x32xf32, #tpu.memory_space<vmem>>, vector<128x32xf32>
    %cst = arith.constant dense<0.000000e+00> : vector<8x128xf32>
    %2 = tpu.matmul %0, %1, %cst {dimension_numbers = #tpu.dot_dimension_numbers<[1], [1], [0], [0], [0, 0, 1, 0], [], []>} : vector<8x32xf32>, vector<128x32xf32>, vector<8x128xf32> -> vector<8x128xf32>
    %c0_3 = arith.constant 0 : index
    %c0_4 = arith.constant 0 : index
    %3 = vector.load %arg4[%c0_3, %c0_4] : memref<8x128xf32, #tpu.memory_space<vmem>>, vector<8x128xf32>
    tpu.vector_store %arg4[%c0_3, %c0_4], %2 {strides = array<i32>} : memref<8x128xf32, #tpu.memory_space<vmem>>, vector<8x128xf32>,
    return
  }
  func.func @transform_0(%arg0: i32, %arg1: i32) -> (i32, i32) {
    %c0_i32 = arith.constant 0 : i32
    %c0_i32_0 = arith.constant 0 : i32
    return %arg0, %c0_i32 : i32, i32
  }
  func.func @transform_1(%arg0: i32, %arg1: i32) -> (i32, i32) {
    %c0_i32 = arith.constant 0 : i32
    %c0_i32_0 = arith.constant 0 : i32
    return %arg1, %c0_i32 : i32, i32
  }
  func.func @transform_2(%arg0: i32, %arg1: i32) -> (i32, i32) {
    %c0_i32 = arith.constant 0 : i32
    return %arg0, %arg1 : i32, i32
  }
}

</mosaic_0001>

<llo_original>
// kernel: fcn2_ensemble_forward.1
$region0: #{fcn2_ensemble_forward.1}
  #allocation0 [shape = 'u32[]', space=smem, size = 0x4, offset = 0x4, fixed_abs, tag = 'smem constant byte address 0x4 - core index']
  #allocation1 [shape = 'u32[144,128]{1,0:T(1,128)}', space=vmem, size = 0x12000, scoped, tag = 'internal scratch']
  %s0 = inlined_call_operand.vmem [shape: f32[8,32], index: 0, kind: input, shape index: {}]
  %s1 = inlined_call_operand.vmem [shape: f32[128,32], index: 1, kind: input, shape index: {}]
  %s2 = inlined_call_operand.vmem [shape: f32[8,128], index: 2, kind: output, shape index: {}]
  %s3 = sld [smem:[#allocation0]]
  $region18: #{fcn2_ensemble_forward.1} parent=0
    _
  %s5 = ssub.s32 1, %s3
  %s6 = scalar_select 0, %s5, %s3
  // Predicated region
  $region2: #{fcn2_ensemble_forward.1} parent=0 // pred_check
    _
  $region3: #{fcn2_ensemble_forward.1} parent=0 // pred_check_branch
    %8 = sbr.rel (0) target = $region5
  $region4: #{fcn2_ensemble_forward.1} parent=0 // pred_region
    _
  $region5: #{fcn2_ensemble_forward.1} parent=0 // pred_fallthru
    _
  // Predicated region
  $region6: #{fcn2_ensemble_forward.1} parent=0 // pred_check
    _
  $region7: #{fcn2_ensemble_forward.1} parent=0 // pred_check_branch
    %10 = sbr.rel (0) target = $region9
  $region8: #{fcn2_ensemble_forward.1} parent=0 // pred_region
    _
  $region9: #{fcn2_ensemble_forward.1} parent=0 // pred_fallthru
    _
  %v11 = vld [vmem:[%s0] sm:$0xff]
  %v12 = vld [vmem:[%s1] sm:$0xff]
  %v13 = vld [vmem:[%s1 + $0x8] sm:$0xff]
  %v14 = vld [vmem:[%s1 + $0x10] sm:$0xff]
  %v15 = vld [vmem:[%s1 + $0x18] sm:$0xff]
  %v16 = vld [vmem:[%s1 + $0x20] sm:$0xff]
  %v17 = vld [vmem:[%s1 + $0x28] sm:$0xff]
  %v18 = vld [vmem:[%s1 + $0x30] sm:$0xff]
  %v19 = vld [vmem:[%s1 + $0x38] sm:$0xff]
  %v20 = vld [vmem:[%s1 + $0x40] sm:$0xff]
  %v21 = vld [vmem:[%s1 + $0x48] sm:$0xff]
  %v22 = vld [vmem:[%s1 + $0x50] sm:$0xff]
  %v23 = vld [vmem:[%s1 + $0x58] sm:$0xff]
  %v24 = vld [vmem:[%s1 + $0x60] sm:$0xff]
  %v25 = vld [vmem:[%s1 + $0x68] sm:$0xff]
  %v26 = vld [vmem:[%s1 + $0x70] sm:$0xff]
  %v27 = vld [vmem:[%s1 + $0x78] sm:$0xff]
  %vm28 = vcmask 261120
  %v30 = vsel %vm28, %v11, 0
  %v33 = vsel %vm28, %v12, 0
  %v36 = vsel %vm28, %v13, 0
  %v39 = vsel %vm28, %v14, 0
  %v42 = vsel %vm28, %v15, 0
  %v45 = vsel %vm28, %v16, 0
  %v48 = vsel %vm28, %v17, 0
  %v51 = vsel %vm28, %v18, 0
  %v54 = vsel %vm28, %v19, 0
  %v57 = vsel %vm28, %v20, 0
  %v60 = vsel %vm28, %v21, 0
  %v63 = vsel %vm28, %v22, 0
  %v66 = vsel %vm28, %v23, 0
  %v69 = vsel %vm28, %v24, 0
  %v72 = vsel %vm28, %v25, 0
  %v75 = vsel %vm28, %v26, 0
  %v78 = vsel %vm28, %v27, 0
  %80 = vmatprep.subr.mxu0 0.0
  %81 = vmatpush1.xpose.msra.mxu0 %v78
  %82 = vmatprep.subr.mxu0 0.0
  %83 = vmatpush1.xpose.msra.mxu0 %v75
  %84 = vmatprep.subr.mxu0 0.0
  %85 = vmatpush1.xpose.msra.mxu0 %v72
  %86 = vmatprep.subr.mxu0 0.0
  %87 = vmatpush1.xpose.msra.mxu0 %v69
  %88 = vmatprep.subr.mxu0 0.0
  %89 = vmatpush1.xpose.msra.mxu0 %v66
  %90 = vmatprep.subr.mxu0 0.0
  %91 = vmatpush1.xpose.msra.mxu0 %v63
  %92 = vmatprep.subr.mxu0 0.0
  %93 = vmatpush1.xpose.msra.mxu0 %v60
  %94 = vmatprep.subr.mxu0 0.0
  %95 = vmatpush1.xpose.msra.mxu0 %v57
  %96 = vmatprep.subr.mxu0 0.0
  %97 = vmatpush1.xpose.msra.mxu0 %v54
  %98 = vmatprep.subr.mxu0 0.0
  %99 = vmatpush1.xpose.msra.mxu0 %v51
  %100 = vmatprep.subr.mxu0 0.0
  %101 = vmatpush1.xpose.msra.mxu0 %v48
  %102 = vmatprep.subr.mxu0 0.0
  %103 = vmatpush1.xpose.msra.mxu0 %v45
  %104 = vmatprep.subr.mxu0 0.0
  %105 = vmatpush1.xpose.msra.mxu0 %v42
  %106 = vmatprep.subr.mxu0 0.0
  %107 = vmatpush1.xpose.msra.mxu0 %v39
  %108 = vmatprep.subr.mxu0 0.0
  %109 = vmatpush1.xpose.msra.mxu0 %v36
  %110 = vmatprep.subr.mxu0 0.0
  %111 = vmatpush1.xpose.msra.mxu0 %v33
  %112 = vmatprep.subr.mxu0 0.0
  %113 = vmatpush2.xpose.msra.mxu0 0.0
  %114 = vmatprep.subr.mxu0 0.0
  %115 = vmatpush2.xpose.msra.mxu0 0.0
  %116 = vmatprep.subr.mxu0 0.0
  %117 = vmatpush2.xpose.msra.mxu0 0.0
  %118 = vmatprep.subr.mxu0 0.0
  %119 = vmatpush2.xpose.msra.mxu0 0.0
  %120 = vmatprep.subr.mxu0 0.0
  %121 = vmatpush2.xpose.msra.mxu0 0.0
  %122 = vmatprep.subr.mxu0 0.0
  %123 = vmatpush2.xpose.msra.mxu0 0.0
  %124 = vmatprep.subr.mxu0 0.0
  %125 = vmatpush2.xpose.msra.mxu0 0.0
  %126 = vmatprep.subr.mxu0 0.0
  %127 = vmatpush2.xpose.msra.mxu0 0.0
  %128 = vmatprep.subr.mxu0 0.0
  %129 = vmatpush2.xpose.msra.mxu0 0.0
  %130 = vmatprep.subr.mxu0 0.0
  %131 = vmatpush2.xpose.msra.mxu0 0.0
  %132 = vmatprep.subr.mxu0 0.0
  %133 = vmatpush2.xpose.msra.mxu0 0.0
  %134 = vmatprep.subr.mxu0 0.0
  %135 = vmatpush2.xpose.msra.mxu0 0.0
  %136 = vmatprep.subr.mxu0 0.0
  %137 = vmatpush2.xpose.msra.mxu0 0.0
  %138 = vmatprep.subr.mxu0 0.0
  %139 = vmatpush2.xpose.msra.mxu0 0.0
  %140 = vmatprep.subr.mxu0 0.0
  %141 = vmatpush2.xpose.msra.mxu0 0.0
  %142 = vmatprep.subr.mxu0 0.0
  %143 = vmatpush2.xpose.msra.mxu0 0.0
  %144 = vmatprep.mubr.f32.mxu0 0.0
  %145 = vmatmul.mubr.f32.gmra.mxu0 %v30
  %v146 = vpop.f32.mrf.mxu0
  %v147 = vadd.f32 0.0, %v146
  %v148 = vpop.f32.mrf.mxu0
  %149 = vdwg.mxu0
  %150 = vst [vmem:[%s2] sm:$0xff] %v147
  // Predicated region
  $region10: #{fcn2_ensemble_forward.1} parent=0 // pred_check
    _
  $region11: #{fcn2_ensemble_forward.1} parent=0 // pred_check_branch
    %152 = sbr.rel (0) target = $region13
  $region12: #{fcn2_ensemble_forward.1} parent=0 // pred_region
    _
  $region13: #{fcn2_ensemble_forward.1} parent=0 // pred_fallthru
    _
  // Predicated region
  $region14: #{fcn2_ensemble_forward.1} parent=0 // pred_check
    _
  $region15: #{fcn2_ensemble_forward.1} parent=0 // pred_check_branch
    %154 = sbr.rel (0) target = $region17
  $region16: #{fcn2_ensemble_forward.1} parent=0 // pred_region
    _
  $region17: #{fcn2_ensemble_forward.1} parent=0 // pred_fallthru
    _

</llo_original>
